<compile_context>
chip_gen: v7x
topology: tpu7x:2x2x1
jax: 0.10.0
libtpu: 0.0.40
codegen_flags: <defaults>
</compile_context>

<pallas_src>
import jax
import jax.numpy as jnp
from jax.experimental import pallas as pl
from jax.experimental.pallas import tpu as pltpu

LANE = 128
SUBLANE = 8


def _round_up(v, m):
    return ((v + m - 1) // m) * m


# ----------------------------------------------------------------------------
# Pallas kernel: full two-layer GCN forward for one graph per grid step.
# Refs (after the squeezed batch dim):
#   adj_ref [N, N] bf16, x_ref [N, F] bf16, w1 [F, H] bf16, b1 [1, H] f32,
#   w2 [H, O] bf16, b2 [1, O] f32, out [N, O] f32.   (F, H, O all padded to 128)
# ----------------------------------------------------------------------------
def siamese_gcn_kernel(adj_ref, x_ref, w1_ref, b1_ref, w2_ref, b2_ref, out_ref):
    adj = adj_ref[...]  # bf16 [N, N], loaded once, reused for both layers.

    # Layer 1: relu(A @ (X @ W1) + b1)   (bf16 MXU, f32 accumulate)
    xw1 = jnp.dot(x_ref[...], w1_ref[...], preferred_element_type=jnp.float32)
    h1 = jnp.dot(adj, xw1.astype(jnp.bfloat16), preferred_element_type=jnp.float32)
    h1 = jnp.maximum(h1 + b1_ref[...], 0.0)  # f32 epilogue (bias + ReLU)

    # Layer 2: A @ (H1 @ W2) + b2
    hw2 = jnp.dot(h1.astype(jnp.bfloat16), w2_ref[...],
                  preferred_element_type=jnp.float32)
    out = jnp.dot(adj, hw2.astype(jnp.bfloat16),
                  preferred_element_type=jnp.float32) + b2_ref[...]
    out_ref[...] = out.astype(out_ref.dtype)


# ----------------------------------------------------------------------------
# Batched forward: B graphs (B = 2 for the Siamese pair) in one pallas_call.
# ----------------------------------------------------------------------------
@jax.jit
def _batched_gcn_forward(adj_b, x_b, w1, b1, w2, b2):
    b, n, _ = adj_b.shape
    f_pad = x_b.shape[-1]
    h_pad = w1.shape[1]
    o_pad = w2.shape[1]

    flops = 2 * b * (n * f_pad * h_pad + n * n * h_pad
                     + n * h_pad * o_pad + n * n * o_pad)
    bytes_accessed = (adj_b.size * adj_b.dtype.itemsize
                      + x_b.size * x_b.dtype.itemsize
                      + w1.size * w1.dtype.itemsize
                      + w2.size * w2.dtype.itemsize
                      + b1.size * b1.dtype.itemsize
                      + b2.size * b2.dtype.itemsize
                      + b * n * o_pad * 4)

    return pl.pallas_call(
        siamese_gcn_kernel,
        out_shape=jax.ShapeDtypeStruct((b, n, o_pad), jnp.float32),
        grid=(b,),
        in_specs=[
            pl.BlockSpec((None, n, n), lambda g: (g, 0, 0)),        # adj  (per graph)
            pl.BlockSpec((None, n, f_pad), lambda g: (g, 0, 0)),    # x    (per graph)
            pl.BlockSpec((f_pad, h_pad), lambda g: (0, 0)),         # W1   (resident)
            pl.BlockSpec((1, h_pad), lambda g: (0, 0)),             # b1   (resident)
            pl.BlockSpec((h_pad, o_pad), lambda g: (0, 0)),         # W2   (resident)
            pl.BlockSpec((1, o_pad), lambda g: (0, 0)),             # b2   (resident)
        ],
        out_specs=pl.BlockSpec((None, n, o_pad), lambda g: (g, 0, 0)),
        compiler_params=pltpu.CompilerParams(
            dimension_semantics=("parallel",)),                     # megacore on v7x
        cost_estimate=pl.CostEstimate(
            flops=flops, transcendentals=0, bytes_accessed=bytes_accessed),
    )(adj_b, x_b, w1, b1, w2, b2)


# ----------------------------------------------------------------------------
# Plain-JAX glue: dense symmetric-normalized adjacency from edge_index.
# Diagonal is set to exactly 1 (dedups multi-edges and pre-existing self-loops).
# ----------------------------------------------------------------------------
def normalized_adjacency(edge_index, num_nodes):
    src, dst = edge_index[0], edge_index[1]
    adj = jnp.zeros((num_nodes, num_nodes), jnp.float32)
    adj = adj.at[src, dst].set(1.0)                      # duplicate edges -> weight 1
    idx = jnp.arange(num_nodes)
    adj = adj.at[idx, idx].set(1.0)                      # self-loops, diag exactly 1
    deg = adj.sum(axis=1)
    dinv_sqrt = jnp.where(deg > 0, jax.lax.rsqrt(deg), 0.0)
    return dinv_sqrt[:, None] * adj * dinv_sqrt[None, :]


def glorot(key, shape):
    fan_in, fan_out = shape
    limit = jnp.sqrt(6.0 / (fan_in + fan_out))
    return jax.random.uniform(key, shape, jnp.float32, -limit, limit)


def _pad2(a, rows, cols):
    return jnp.pad(a, ((0, rows - a.shape[0]), (0, cols - a.shape[1])))


class SiameseGNNPallas:
    """Mirrors GCNConv(input_dim, hidden_dim) + GCNConv(hidden_dim, output_dim)."""

    def __init__(self, input_dim, hidden_dim, output_dim, key):
        self.input_dim = input_dim
        self.hidden_dim = hidden_dim
        self.output_dim = output_dim
        self.f_pad = _round_up(input_dim, LANE)
        self.h_pad = _round_up(hidden_dim, LANE)
        self.o_pad = _round_up(output_dim, LANE)

        k1, k2 = jax.random.split(key)
        w1 = glorot(k1, (input_dim, hidden_dim))
        w2 = glorot(k2, (hidden_dim, output_dim))
        # Lane-dense, bf16 matmul operands; f32 biases for the epilogue.
        self.w1 = _pad2(w1, self.f_pad, self.h_pad).astype(jnp.bfloat16)
        self.w2 = _pad2(w2, self.h_pad, self.o_pad).astype(jnp.bfloat16)
        self.b1 = jnp.zeros((1, self.h_pad), jnp.float32)
        self.b2 = jnp.zeros((1, self.o_pad), jnp.float32)
        # Unpadded f32 copies (for a pure-JAX reference check).
        self._w1_f32 = w1
        self._w2_f32 = w2

    def _prep_batch(self, graphs):
        # Pad every graph to a common, sublane-aligned node count so both
        # Siamese graphs (even with different N) share one batched pallas_call.
        n_pad = _round_up(max(x.shape[0] for x, _ in graphs), SUBLANE)
        adjs, xs, ns = [], [], []
        for x, edge_index in graphs:
            n = x.shape[0]
            ns.append(n)
            a = normalized_adjacency(edge_index, n)
            adjs.append(jnp.pad(a, ((0, n_pad - n), (0, n_pad - n))))
            xs.append(jnp.pad(x, ((0, n_pad - n), (0, self.f_pad - x.shape[1]))))
        adj_b = jnp.stack(adjs).astype(jnp.bfloat16)
        x_b = jnp.stack(xs).astype(jnp.bfloat16)
        return adj_b, x_b, ns

    def forward(self, x, edge_index):
        adj_b, x_b, ns = self._prep_batch([(x, edge_index)])
        out = _batched_gcn_forward(adj_b, x_b, self.w1, self.b1, self.w2, self.b2)
        return out[0, : ns[0], : self.output_dim]

    def encode(self, g1, g2):
        # Both Siamese graphs fused into one pallas_call (grid axis of size 2).
        adj_b, x_b, ns = self._prep_batch([g1, g2])
        out = _batched_gcn_forward(adj_b, x_b, self.w1, self.b1, self.w2, self.b2)
        return (out[0, : ns[0], : self.output_dim],
                out[1, : ns[1], : self.output_dim])

    # Pure-JAX f32 reference (same math, no Pallas) for correctness checking.
    def reference(self, x, edge_index):
        adj = normalized_adjacency(edge_index, x.shape[0])
        h1 = jnp.maximum(adj @ (x @ self._w1_f32), 0.0)
        return adj @ (h1 @ self._w2_f32)


# ----------------------------------------------------------------------------
# Demo / smoke test
# ----------------------------------------------------------------------------
def make_graph(key, num_nodes, num_edges, input_dim):
    kx, ke = jax.random.split(key)
    x = jax.random.normal(kx, (num_nodes, input_dim), jnp.float32)
    ei = jax.random.randint(ke, (2, num_edges), 0, num_nodes, jnp.int32)
    edge_index = jnp.concatenate([ei, ei[::-1]], axis=1)  # symmetrize
    return x, edge_index


if __name__ == "__main__":
    key = jax.random.PRNGKey(0)
    k_model, k_g1, k_g2 = jax.random.split(key, 3)

    NUM_NODES = 64
    NUM_EDGES = 128
    INPUT_DIM = 16
    HIDDEN_DIM = 32
    OUTPUT_DIM = 16

    model = SiameseGNNPallas(INPUT_DIM, HIDDEN_DIM, OUTPUT_DIM, k_model)

    g1 = make_graph(k_g1, NUM_NODES, NUM_EDGES, INPUT_DIM)
    g2 = make_graph(k_g2, NUM_NODES, NUM_EDGES, INPUT_DIM)

    g1_embed, g2_embed = model.encode(g1, g2)
    jax.block_until_ready((g1_embed, g2_embed))

    assert g1_embed.shape == (NUM_NODES, OUTPUT_DIM)
    assert g2_embed.shape == (NUM_NODES, OUTPUT_DIM)
    assert jnp.all(jnp.isfinite(g1_embed)) and jnp.all(jnp.isfinite(g2_embed))

    # Loose-tolerance check against the f32 reference (bf16 matmul, f32 accum).
    ref1 = model.reference(*g1)
    ref2 = model.reference(*g2)
    assert jnp.max(jnp.abs(g1_embed - ref1)) < 1e-1
    assert jnp.max(jnp.abs(g2_embed - ref2)) < 1e-1

    print("KERNEL_OK")
</pallas_src>

<mosaic_0001>
module attributes {stable_mosaic.version = 11 : i64} {
  func.func @siamese_gcn_kernel(%arg0: i32, %arg1: memref<1x64x64xbf16, #tpu.memory_space<vmem>>, %arg2: memref<1x64x128xbf16, #tpu.memory_space<vmem>>, %arg3: memref<128x128xbf16, #tpu.memory_space<vmem>>, %arg4: memref<1x128xf32, #tpu.memory_space<vmem>>, %arg5: memref<128x128xbf16, #tpu.memory_space<vmem>>, %arg6: memref<1x128xf32, #tpu.memory_space<vmem>>, %arg7: memref<1x64x128xf32, #tpu.memory_space<vmem>>) attributes {dimension_semantics = [#tpu.dimension_semantics<parallel>], iteration_bounds = array<i64: 2>, scalar_prefetch = 0 : i64, scratch_operands = 0 : i64, tpu.core_type = #tpu.core_type<tc>, window_params = [{transform_indices = @transform_0, window_bounds = array<i64: 1, 64, 64>}, {transform_indices = @transform_1, window_bounds = array<i64: 1, 64, 128>}, {pipeline_mode = #tpu.pipeline_mode<synchronous>, transform_indices = @transform_2, window_bounds = array<i64: 128, 128>}, {pipeline_mode = #tpu.pipeline_mode<synchronous>, transform_indices = @transform_3, window_bounds = array<i64: 1, 128>}, {pipeline_mode = #tpu.pipeline_mode<synchronous>, transform_indices = @transform_4, window_bounds = array<i64: 128, 128>}, {pipeline_mode = #tpu.pipeline_mode<synchronous>, transform_indices = @transform_5, window_bounds = array<i64: 1, 128>}, {transform_indices = @transform_6, window_bounds = array<i64: 1, 64, 128>}]} {
    %c0 = arith.constant 0 : index
    %c0_0 = arith.constant 0 : index
    %c0_1 = arith.constant 0 : index
    %0 = vector.load %arg1[%c0, %c0_0, %c0_1] : memref<1x64x64xbf16, #tpu.memory_space<vmem>>, vector<1x64x64xbf16>
    %1 = vector.shape_cast %0 : vector<1x64x64xbf16> to vector<64x64xbf16>
    %c0_2 = arith.constant 0 : index
    %c0_3 = arith.constant 0 : index
    %c0_4 = arith.constant 0 : index
    %2 = vector.load %arg2[%c0_2, %c0_3, %c0_4] : memref<1x64x128xbf16, #tpu.memory_space<vmem>>, vector<1x64x128xbf16>
    %3 = vector.shape_cast %2 : vector<1x64x128xbf16> to vector<64x128xbf16>
    %c0_5 = arith.constant 0 : index
    %c0_6 = arith.constant 0 : index
    %4 = vector.load %arg3[%c0_5, %c0_6] : memref<128x128xbf16, #tpu.memory_space<vmem>>, vector<128x128xbf16>
    %cst = arith.constant dense<0.000000e+00> : vector<64x128xf32>
    %5 = tpu.matmul %3, %4, %cst {dimension_numbers = #tpu.dot_dimension_numbers<[1], [0], [0], [1], [0, 0, 1, 1], [], []>} : vector<64x128xbf16>, vector<128x128xbf16>, vector<64x128xf32> -> vector<64x128xf32>
    %6 = arith.truncf %5 : vector<64x128xf32> to vector<64x128xbf16>
    %cst_7 = arith.constant dense<0.000000e+00> : vector<64x128xf32>
    %7 = tpu.matmul %1, %6, %cst_7 {dimension_numbers = #tpu.dot_dimension_numbers<[1], [0], [0], [1], [0, 0, 1, 1], [], []>} : vector<64x64xbf16>, vector<64x128xbf16>, vector<64x128xf32> -> vector<64x128xf32>
    %c0_8 = arith.constant 0 : index
    %c0_9 = arith.constant 0 : index
    %8 = vector.load %arg4[%c0_8, %c0_9] : memref<1x128xf32, #tpu.memory_space<vmem>>, vector<1x128xf32>
    %9 = vector.broadcast %8 : vector<1x128xf32> to vector<64x128xf32>
    %10 = arith.addf %7, %9 : vector<64x128xf32>
    %cst_10 = arith.constant 0.000000e+00 : f32
    %11 = vector.broadcast %cst_10 : f32 to vector<64x128xf32>
    %12 = arith.maximumf %10, %11 : vector<64x128xf32>
    %13 = arith.truncf %12 : vector<64x128xf32> to vector<64x128xbf16>
    %c0_11 = arith.constant 0 : index
    %c0_12 = arith.constant 0 : index
    %14 = vector.load %arg5[%c0_11, %c0_12] : memref<128x128xbf16, #tpu.memory_space<vmem>>, vector<128x128xbf16>
    %cst_13 = arith.constant dense<0.000000e+00> : vector<64x128xf32>
    %15 = tpu.matmul %13, %14, %cst_13 {dimension_numbers = #tpu.dot_dimension_numbers<[1], [0], [0], [1], [0, 0, 1, 1], [], []>} : vector<64x128xbf16>, vector<128x128xbf16>, vector<64x128xf32> -> vector<64x128xf32>
    %16 = arith.truncf %15 : vector<64x128xf32> to vector<64x128xbf16>
    %cst_14 = arith.constant dense<0.000000e+00> : vector<64x128xf32>
    %17 = tpu.matmul %1, %16, %cst_14 {dimension_numbers = #tpu.dot_dimension_numbers<[1], [0], [0], [1], [0, 0, 1, 1], [], []>} : vector<64x64xbf16>, vector<64x128xbf16>, vector<64x128xf32> -> vector<64x128xf32>
    %c0_15 = arith.constant 0 : index
    %c0_16 = arith.constant 0 : index
    %18 = vector.load %arg6[%c0_15, %c0_16] : memref<1x128xf32, #tpu.memory_space<vmem>>, vector<1x128xf32>
    %19 = vector.broadcast %18 : vector<1x128xf32> to vector<64x128xf32>
    %20 = arith.addf %17, %19 : vector<64x128xf32>
    %c0_17 = arith.constant 0 : index
    %c0_18 = arith.constant 0 : index
    %c0_19 = arith.constant 0 : index
    %21 = vector.load %arg7[%c0_17, %c0_18, %c0_19] : memref<1x64x128xf32, #tpu.memory_space<vmem>>, vector<1x64x128xf32>
    %22 = vector.shape_cast %21 : vector<1x64x128xf32> to vector<64x128xf32>
    %23 = vector.shape_cast %20 : vector<64x128xf32> to vector<1x64x128xf32>
    tpu.vector_store %arg7[%c0_17, %c0_18, %c0_19], %23 {strides = array<i32>} : memref<1x64x128xf32, #tpu.memory_space<vmem>>, vector<1x64x128xf32>,
    return
  }
  func.func @transform_0(%arg0: i32) -> (i32, i32, i32) {
    %c0_i32 = arith.constant 0 : i32
    %c0_i32_0 = arith.constant 0 : i32
    %c0_i32_1 = arith.constant 0 : i32
    return %arg0, %c0_i32, %c0_i32_0 : i32, i32, i32
  }
  func.func @transform_1(%arg0: i32) -> (i32, i32, i32) {
    %c0_i32 = arith.constant 0 : i32
    %c0_i32_0 = arith.constant 0 : i32
    %c0_i32_1 = arith.constant 0 : i32
    return %arg0, %c0_i32, %c0_i32_0 : i32, i32, i32
  }
  func.func @transform_2(%arg0: i32) -> (i32, i32) {
    %c0_i32 = arith.constant 0 : i32
    %c0_i32_0 = arith.constant 0 : i32
    %c0_i32_1 = arith.constant 0 : i32
    return %c0_i32, %c0_i32_0 : i32, i32
  }
  func.func @transform_3(%arg0: i32) -> (i32, i32) {
    %c0_i32 = arith.constant 0 : i32
    %c0_i32_0 = arith.constant 0 : i32
    %c0_i32_1 = arith.constant 0 : i32
    return %c0_i32, %c0_i32_0 : i32, i32
  }
  func.func @transform_4(%arg0: i32) -> (i32, i32) {
    %c0_i32 = arith.constant 0 : i32
    %c0_i32_0 = arith.constant 0 : i32
    %c0_i32_1 = arith.constant 0 : i32
    return %c0_i32, %c0_i32_0 : i32, i32
  }
  func.func @transform_5(%arg0: i32) -> (i32, i32) {
    %c0_i32 = arith.constant 0 : i32
    %c0_i32_0 = arith.constant 0 : i32
    %c0_i32_1 = arith.constant 0 : i32
    return %c0_i32, %c0_i32_0 : i32, i32
  }
  func.func @transform_6(%arg0: i32) -> (i32, i32, i32) {
    %c0_i32 = arith.constant 0 : i32
    %c0_i32_0 = arith.constant 0 : i32
    %c0_i32_1 = arith.constant 0 : i32
    return %arg0, %c0_i32, %c0_i32_0 : i32, i32, i32
  }
}

</mosaic_0001>

<llo_original>
// kernel: _batched_gcn_forward.1
$region0: #{_batched_gcn_forward.1}
  #allocation0 [shape = 'u32[]', space=smem, size = 0x4, offset = 0x4, fixed_abs, tag = 'smem constant byte address 0x4 - core index']
  #allocation1 [shape = 'u32[144,128]{1,0:T(1,128)}', space=vmem, size = 0x12000, scoped, tag = 'internal scratch']
  %s0 = inlined_call_operand.hbm [shape: bf16[2,64,64], index: 0, kind: input, shape index: {}]
  %s1 = inlined_call_operand.hbm [shape: bf16[2,64,128], index: 1, kind: input, shape index: {}]
  %s2 = inlined_call_operand.hbm [shape: bf16[128,128], index: 2, kind: input, shape index: {}]
  %s3 = inlined_call_operand.vmem [shape: f32[1,128], index: 3, kind: input, shape index: {}]
  %s4 = inlined_call_operand.hbm [shape: bf16[128,128], index: 4, kind: input, shape index: {}]
  %s5 = inlined_call_operand.vmem [shape: f32[1,128], index: 5, kind: input, shape index: {}]
  %s6 = inlined_call_operand.hbm [shape: f32[2,64,128], index: 6, kind: output, shape index: {}]
  %s7 = sld [smem:[#allocation0]]
  $region73: #{_batched_gcn_forward.1} parent=0
    _
  %s9 = ssub.s32 1, %s7
  %s10 = scalar_select 0, %s9, %s7
  $region1: #{_batched_gcn_forward.1} parent=0
    #allocation2 [shape = 'u8[32768]{0}', space=vmem, size = 0x8000, scoped, tag = 'input window, operand 0']
    #allocation3 [shape = 's32[2]{0}', space=sflag, size = 0x8, scoped, tag = 'scoped memory for _batched_gcn_forward.1']
    #allocation4 [shape = 's32[2]{0}', space=sflag, size = 0x8, scoped, tag = 'scoped memory for _batched_gcn_forward.1']
    #allocation5 [shape = 'u8[32768]{0}', space=vmem, size = 0x8000, scoped, tag = 'input window, operand 1']
    #allocation6 [shape = 's32[2]{0}', space=sflag, size = 0x8, scoped, tag = 'scoped memory for _batched_gcn_forward.1']
    #allocation7 [shape = 'u8[32768]{0}', space=vmem, size = 0x8000, scoped, tag = 'input window, operand 2, single buffered']
    #allocation8 [shape = 'u8[32768]{0}', space=vmem, size = 0x8000, scoped, tag = 'input window, operand 4, single buffered']
    #allocation9 [shape = 's32[1]{0}', space=sflag, size = 0x4, scoped, tag = 'scoped memory for _batched_gcn_forward.1']
    #allocation10 [shape = 'u8[65536]{0}', space=vmem, size = 0x10000, scoped, tag = 'output window, operand 0']
    %11 = vsyncpa [#allocation3], 0
    %s12 = scalar_lea.sflag [#allocation3], 1
    %13 = vsyncpa %s12, 0
    %14 = vsyncpa [#allocation6], 0
    %s15 = scalar_lea.sflag [#allocation6], 1
    %16 = vsyncpa %s15, 0
    %17 = vsyncpa [#allocation9], 0
    %18 = vsyncpa [#allocation4], 0
    %s19 = scalar_lea.sflag [#allocation4], 1
    %20 = vsyncpa %s19, 0
    loop: start=0, step=1, limit=4
    $region2: #{_batched_gcn_forward.1} parent=1 // loop_pre_header
      _
    $region3: #{_batched_gcn_forward.1} parent=1 // loop_header
      %s22 = sphi 0, %s26
      %p23 = scmp.ge.s32.totalorder %s22, 4
      %s32 = sphi 0, %s34
      %s35 = sphi 0, %s32
      %s36 = sphi 0, %s35
      %s52 = sphi 0, %s36
      %s58 = sphi 0, %s60
      %s61 = sphi 0, %s58
      %s62 = sphi 0, %s61
      %s78 = sphi 0, %s62
      %s82 = sphi 0, %s82
      %s84 = sphi 0, %s82
      %s85 = sphi 0, %s84
      %s99 = sphi 0, %s85
      %s103 = sphi 0, %s103
      %s105 = sphi 0, %s103
      %s106 = sphi 0, %s105
      %s120 = sphi 0, %s106
      %s124 = sphi 0, %s124
      %s126 = sphi 0, %s124
      %s127 = sphi 0, %s126
      %s141 = sphi 0, %s127
      %s145 = sphi 0, %s145
      %s147 = sphi 0, %s145
      %s148 = sphi 0, %s147
      %s162 = sphi 0, %s148
      %s168 = sphi 0, %s170
      %s171 = sphi 0, %s168
      %s172 = sphi 0, %s171
      %s188 = sphi 0, %s172
    $region4: #{_batched_gcn_forward.1} parent=1 // loop_header_branch
      %25 = sbr.rel (%p23) target = $region8
    $region5: #{_batched_gcn_forward.1} parent=1 // loop_body
      %s27 = ssub.s32 %s22, 1
      %s28 = ssub.s32 %s22, 2
      %s29 = sadd.s32 %s22, 1
      %s30 = ssub.s32 %s22, %s29
      %p31 = scmp.eq.s32.totalorder %s30, 0
      %s33 = sadd.s32 %s32, 1
      %s34 = scalar_select %p31, %s32, %s33
      %p37 = pneg %p31
      %p38 = scmp.eq.s32.totalorder %s22, 1
      %p39 = por %p37, %p38
      %p40 = scmp.ne.s32.totalorder %s32, %s35
      %p41 = scmp.eq.s32.totalorder %s22, 0
      %p42 = por %p40, %p41
      %p43 = scmp.ne.s32.totalorder %s32, %s35
      %p44 = scmp.eq.s32.totalorder %s27, 1
      %p45 = por %p43, %p44
      %p46 = scmp.ne.s32.totalorder %s35, %s36
      %p47 = scmp.eq.s32.totalorder %s27, 0
      %p48 = por %p46, %p47
      %p49 = scmp.ne.s32.totalorder %s35, %s36
      %p50 = scmp.eq.s32.totalorder %s28, 1
      %p51 = por %p49, %p50
      %p53 = scmp.ne.s32.totalorder %s36, %s52
      %p54 = scmp.eq.s32.totalorder %s28, 0
      %p55 = por %p53, %p54
      %s56 = ssub.s32 %s22, %s29
      %p57 = scmp.eq.s32.totalorder %s56, 0
      %s59 = sadd.s32 %s58, 1
      %s60 = scalar_select %p57, %s58, %s59
      %p63 = pneg %p57
      %p64 = scmp.eq.s32.totalorder %s22, 1
      %p65 = por %p63, %p64
      %p66 = scmp.ne.s32.totalorder %s58, %s61
      %p67 = scmp.eq.s32.totalorder %s22, 0
      %p68 = por %p66, %p67
      %p69 = scmp.ne.s32.totalorder %s58, %s61
      %p70 = scmp.eq.s32.totalorder %s27, 1
      %p71 = por %p69, %p70
      %p72 = scmp.ne.s32.totalorder %s61, %s62
      %p73 = scmp.eq.s32.totalorder %s27, 0
      %p74 = por %p72, %p73
      %p75 = scmp.ne.s32.totalorder %s61, %s62
      %p76 = scmp.eq.s32.totalorder %s28, 1
      %p77 = por %p75, %p76
      %p79 = scmp.ne.s32.totalorder %s62, %s78
      %p80 = scmp.eq.s32.totalorder %s28, 0
      %p81 = por %p79, %p80
      %s83 = sadd.s32 %s82, 1
      %p86 = scmp.eq.s32.totalorder %s22, 1
      %p87 = scmp.ne.s32.totalorder %s82, %s84
      %p88 = scmp.eq.s32.totalorder %s22, 0
      %p89 = por %p87, %p88
      %p90 = scmp.ne.s32.totalorder %s82, %s84
      %p91 = scmp.eq.s32.totalorder %s27, 1
      %p92 = por %p90, %p91
      %p93 = scmp.ne.s32.totalorder %s84, %s85
      %p94 = scmp.eq.s32.totalorder %s27, 0
      %p95 = por %p93, %p94
      %p96 = scmp.ne.s32.totalorder %s84, %s85
      %p97 = scmp.eq.s32.totalorder %s28, 1
      %p98 = por %p96, %p97
      %p100 = scmp.ne.s32.totalorder %s85, %s99
      %p101 = scmp.eq.s32.totalorder %s28, 0
      %p102 = por %p100, %p101
      %s104 = sadd.s32 %s103, 1
      %p107 = scmp.eq.s32.totalorder %s22, 1
      %p108 = scmp.ne.s32.totalorder %s103, %s105
      %p109 = scmp.eq.s32.totalorder %s22, 0
      %p110 = por %p108, %p109
      %p111 = scmp.ne.s32.totalorder %s103, %s105
      %p112 = scmp.eq.s32.totalorder %s27, 1
      %p113 = por %p111, %p112
      %p114 = scmp.ne.s32.totalorder %s105, %s106
      %p115 = scmp.eq.s32.totalorder %s27, 0
      %p116 = por %p114, %p115
      %p117 = scmp.ne.s32.totalorder %s105, %s106
      %p118 = scmp.eq.s32.totalorder %s28, 1
      %p119 = por %p117, %p118
      %p121 = scmp.ne.s32.totalorder %s106, %s120
      %p122 = scmp.eq.s32.totalorder %s28, 0
      %p123 = por %p121, %p122
      %s125 = sadd.s32 %s124, 1
      %p128 = scmp.eq.s32.totalorder %s22, 1
      %p129 = scmp.ne.s32.totalorder %s124, %s126
      %p130 = scmp.eq.s32.totalorder %s22, 0
      %p131 = por %p129, %p130
      %p132 = scmp.ne.s32.totalorder %s124, %s126
      %p133 = scmp.eq.s32.totalorder %s27, 1
      %p134 = por %p132, %p133
      %p135 = scmp.ne.s32.totalorder %s126, %s127
      %p136 = scmp.eq.s32.totalorder %s27, 0
      %p137 = por %p135, %p136
      %p138 = scmp.ne.s32.totalorder %s126, %s127
      %p139 = scmp.eq.s32.totalorder %s28, 1
      %p140 = por %p138, %p139
      %p142 = scmp.ne.s32.totalorder %s127, %s141
      %p143 = scmp.eq.s32.totalorder %s28, 0
      %p144 = por %p142, %p143
      %s146 = sadd.s32 %s145, 1
      %p149 = scmp.eq.s32.totalorder %s22, 1
      %p150 = scmp.ne.s32.totalorder %s145, %s147
      %p151 = scmp.eq.s32.totalorder %s22, 0
      %p152 = por %p150, %p151
      %p153 = scmp.ne.s32.totalorder %s145, %s147
      %p154 = scmp.eq.s32.totalorder %s27, 1
      %p155 = por %p153, %p154
      %p156 = scmp.ne.s32.totalorder %s147, %s148
      %p157 = scmp.eq.s32.totalorder %s27, 0
      %p158 = por %p156, %p157
      %p159 = scmp.ne.s32.totalorder %s147, %s148
      %p160 = scmp.eq.s32.totalorder %s28, 1
      %p161 = por %p159, %p160
      %p163 = scmp.ne.s32.totalorder %s148, %s162
      %p164 = scmp.eq.s32.totalorder %s28, 0
      %p165 = por %p163, %p164
      %s166 = ssub.s32 %s22, %s29
      %p167 = scmp.eq.s32.totalorder %s166, 0
      %s169 = sadd.s32 %s168, 1
      %s170 = scalar_select %p167, %s168, %s169
      %p173 = pneg %p167
      %p174 = scmp.eq.s32.totalorder %s22, 1
      %p175 = por %p173, %p174
      %p176 = scmp.ne.s32.totalorder %s168, %s171
      %p177 = scmp.eq.s32.totalorder %s22, 0
      %p178 = por %p176, %p177
      %p179 = scmp.ne.s32.totalorder %s168, %s171
      %p180 = scmp.eq.s32.totalorder %s27, 1
      %p181 = por %p179, %p180
      %p182 = scmp.ne.s32.totalorder %s171, %s172
      %p183 = scmp.eq.s32.totalorder %s27, 0
      %p184 = por %p182, %p183
      %p185 = scmp.ne.s32.totalorder %s171, %s172
      %p186 = scmp.eq.s32.totalorder %s28, 1
      %p187 = por %p185, %p186
      %p189 = scmp.ne.s32.totalorder %s172, %s188
      %p190 = scmp.eq.s32.totalorder %s28, 0
      %p191 = por %p189, %p190
      %p192 = scmp.le.s32.totalorder 1, %s22
      %p193 = scmp.lt.s32.totalorder %s22, 3
      %p194 = pnand %p192, %p193
      %p195 = pneg %p194
      // Predicated region
      $region9: #{_batched_gcn_forward.1} parent=5 // pred_check
        _
      $region10: #{_batched_gcn_forward.1} parent=5 // pred_check_branch
        %197 = sbr.rel (%p194) target = $region12
      $region11: #{_batched_gcn_forward.1} parent=5 // pred_region
        %s198 = ssub.s32 %s22, 1
        // Predicated region
        $region13: #{_batched_gcn_forward.1} parent=11 // pred_check
          %p199 = pneg %p95
        $region14: #{_batched_gcn_forward.1} parent=11 // pred_check_branch
          %201 = sbr.rel (%p199) target = $region16
        $region15: #{_batched_gcn_forward.1} parent=11 // pred_region
          %s203 = ssub.s32 1024, 1024
          %204 = vsyncadd [#allocation6], %s203
          %s205 = sshll.u32 [#allocation7], 4
          %s206 = int_to_ptr.vmem [resolvable:$true] %s205
          %211 = dma.hbm_to_vmem [thread:$0]  %s2, 1024, %s206, [#allocation6], 64, 64, 4
        $region16: #{_batched_gcn_forward.1} parent=11 // pred_fallthru
          _
        // Predicated region
        $region17: #{_batched_gcn_forward.1} parent=11 // pred_check
          %p212 = pneg %p116
        $region18: #{_batched_gcn_forward.1} parent=11 // pred_check_branch
          %214 = sbr.rel (%p212) target = $region20
        $region19: #{_batched_gcn_forward.1} parent=11 // pred_region
          _
        $region20: #{_batched_gcn_forward.1} parent=11 // pred_fallthru
          _
        // Predicated region
        $region21: #{_batched_gcn_forward.1} parent=11 // pred_check
          %p215 = pneg %p137
        $region22: #{_batched_gcn_forward.1} parent=11 // pred_check_branch
          %217 = sbr.rel (%p215) target = $region24
        $region23: #{_batched_gcn_forward.1} parent=11 // pred_region
          %s219 = ssub.s32 1024, 1024
          %220 = vsyncadd [#allocation9], %s219
          %s221 = sshll.u32 [#allocation8], 4
          %s222 = int_to_ptr.vmem [resolvable:$true] %s221
          %227 = dma.hbm_to_vmem [thread:$0]  %s4, 1024, %s222, [#allocation9], 64, 64, 4
        $region24: #{_batched_gcn_forward.1} parent=11 // pred_fallthru
          _
        // Predicated region
        $region25: #{_batched_gcn_forward.1} parent=11 // pred_check
          %p228 = pneg %p158
        $region26: #{_batched_gcn_forward.1} parent=11 // pred_check_branch
          %230 = sbr.rel (%p228) target = $region28
        $region27: #{_batched_gcn_forward.1} parent=11 // pred_region
          _
        $region28: #{_batched_gcn_forward.1} parent=11 // pred_fallthru
          _
      $region12: #{_batched_gcn_forward.1} parent=5 // pred_fallthru
        _
      %p231 = scmp.lt.s32.totalorder %s22, 2
      // Predicated region
      $region29: #{_batched_gcn_forward.1} parent=5 // pred_check
        %p232 = pneg %p231
      $region30: #{_batched_gcn_forward.1} parent=5 // pred_check_branch
        %234 = sbr.rel (%p232) target = $region32
      $region31: #{_batched_gcn_forward.1} parent=5 // pred_region
        // Predicated region
        $region33: #{_batched_gcn_forward.1} parent=31 // pred_check
          %p235 = pneg %p42
        $region34: #{_batched_gcn_forward.1} parent=31 // pred_check_branch
          %237 = sbr.rel (%p235) target = $region36
        $region35: #{_batched_gcn_forward.1} parent=31 // pred_region
          %s238 = sand.u32 %s32, 1
          %s239 = scalar_lea.sflag [#allocation3], %s238
          %s240 = sand.u32 %s32, 1
          %s241 = smul.addr %s240, 32
          %s242 = scalar_lea.vmem [#allocation2], %s241
          %s244 = ssub.s32 512, 512
          %245 = vsyncadd %s239, %s244
          %s246 = smul.addr %s22, 8
          %s247 = smul.addr %s246, 64
          %s248 = scalar_lea.hbm %s0, %s247
          %s249 = sshll.u32 %s242, 4
          %s250 = int_to_ptr.vmem [resolvable:$true] %s249
          %255 = dma.hbm_to_vmem [thread:$0]  %s248, 512, %s250, %s239, 64, 64, 4
        $region36: #{_batched_gcn_forward.1} parent=31 // pred_fallthru
          _
        // Predicated region
        $region37: #{_batched_gcn_forward.1} parent=31 // pred_check
          %p256 = pneg %p68
        $region38: #{_batched_gcn_forward.1} parent=31 // pred_check_branch
          %258 = sbr.rel (%p256) target = $region40
        $region39: #{_batched_gcn_forward.1} parent=31 // pred_region
          %s259 = sand.u32 %s22, 1
          %s260 = scalar_lea.sflag [#allocation6], %s259
          %s261 = sand.u32 %s58, 1
          %s262 = smul.addr %s261, 32
          %s263 = scalar_lea.vmem [#allocation5], %s262
          %s265 = ssub.s32 512, 512
          %266 = vsyncadd %s260, %s265
          %s267 = smul.addr %s22, 8
          %s268 = smul.addr %s267, 64
          %s269 = scalar_lea.hbm %s1, %s268
          %s270 = sshll.u32 %s263, 4
          %s271 = int_to_ptr.vmem [resolvable:$true] %s270
          %276 = dma.hbm_to_vmem [thread:$0]  %s269, 512, %s271, %s260, 64, 64, 4
        $region40: #{_batched_gcn_forward.1} parent=31 // pred_fallthru
          _
      $region32: #{_batched_gcn_forward.1} parent=5 // pred_fallthru
        _
      %p277 = scmp.le.s32.totalorder 1, %s22
      %p278 = scmp.lt.s32.totalorder %s22, 3
      %p279 = pnand %p277, %p278
      %p280 = pneg %p279
      // Predicated region
      $region41: #{_batched_gcn_forward.1} parent=5 // pred_check
        _
      $region42: #{_batched_gcn_forward.1} parent=5 // pred_check_branch
        %282 = sbr.rel (%p279) target = $region44
      $region43: #{_batched_gcn_forward.1} parent=5 // pred_region
        %s283 = ssub.s32 %s22, 1
        %s284 = sand.u32 %s35, 1
        %s285 = scalar_lea.sflag [#allocation3], %s284
        %s286 = sand.u32 %s35, 1
        %s287 = smul.addr %s286, 32
        %s288 = scalar_lea.vmem [#allocation2], %s287
        // Predicated region
        $region45: #{_batched_gcn_forward.1} parent=43 // pred_check
          %p289 = pneg %p48
        $region46: #{_batched_gcn_forward.1} parent=43 // pred_check_branch
          %291 = sbr.rel (%p289) target = $region48
        $region47: #{_batched_gcn_forward.1} parent=43 // pred_region
          %292 = dma.done %s285, 512
        $region48: #{_batched_gcn_forward.1} parent=43 // pred_fallthru
          _
        %s293 = sand.u32 %s27, 1
        %s294 = scalar_lea.sflag [#allocation6], %s293
        %s295 = sand.u32 %s61, 1
        %s296 = smul.addr %s295, 32
        %s297 = scalar_lea.vmem [#allocation5], %s296
        // Predicated region
        $region49: #{_batched_gcn_forward.1} parent=43 // pred_check
          %p298 = pneg %p74
        $region50: #{_batched_gcn_forward.1} parent=43 // pred_check_branch
          %300 = sbr.rel (%p298) target = $region52
        $region51: #{_batched_gcn_forward.1} parent=43 // pred_region
          %301 = dma.done %s294, 512
        $region52: #{_batched_gcn_forward.1} parent=43 // pred_fallthru
          _
        // Predicated region
        $region53: #{_batched_gcn_forward.1} parent=43 // pred_check
          %p302 = pneg %p95
        $region54: #{_batched_gcn_forward.1} parent=43 // pred_check_branch
          %304 = sbr.rel (%p302) target = $region56
        $region55: #{_batched_gcn_forward.1} parent=43 // pred_region
          %305 = dma.done [#allocation6], 1024
        $region56: #{_batched_gcn_forward.1} parent=43 // pred_fallthru
          _
        // Predicated region
        $region57: #{_batched_gcn_forward.1} parent=43 // pred_check
          %p306 = pneg %p137
        $region58: #{_batched_gcn_forward.1} parent=43 // pred_check_branch
          %308 = sbr.rel (%p306) target = $region60
        $region59: #{_batched_gcn_forward.1} parent=43 // pred_region
          %309 = dma.done [#allocation9], 1024
        $region60: #{_batched_gcn_forward.1} parent=43 // pred_fallthru
          _
        %s310 = sand.u32 %s35, 1
        %s311 = scalar_lea.sflag [#allocation3], %s310
        %s312 = sand.u32 %s35, 1
        %s313 = smul.addr %s312, 32
        %s314 = scalar_lea.vmem [#allocation2], %s313
        %p315 = pneg %p48
        %p316 = pneg %p45
        %s317 = sand.u32 %s27, 1
        %s318 = scalar_lea.sflag [#allocation6], %s317
        %s319 = sand.u32 %s61, 1
        %s320 = smul.addr %s319, 32
        %s321 = scalar_lea.vmem [#allocation5], %s320
        %p322 = pneg %p74
        %p323 = pneg %p71
        %p324 = pneg %p95
        %p325 = pneg %p92
        %p326 = pneg %p116
        %p327 = pneg %p113
        %p328 = pneg %p137
        %p329 = pneg %p134
        %p330 = pneg %p158
        %p331 = pneg %p155
        %p332 = pneg %p184
        %p333 = pneg %p181
        %s334 = sand.u32 %s171, 1
        %s335 = scalar_lea.sflag [#allocation4], %s334
        %s336 = sand.u32 %s171, 1
        %s337 = smul.addr %s336, 64
        %s338 = scalar_lea.vmem [#allocation10], %s337
        %v340 = vld [vmem:[%s288] sm:$0xf]
        %v341 = vld [vmem:[%s288 + $0x4] sm:$0xf]
        %v342 = vld [vmem:[%s288 + $0x8] sm:$0xf]
        %v343 = vld [vmem:[%s288 + $0xc] sm:$0xf]
        %v344 = vld [vmem:[%s288 + $0x10] sm:$0xf]
        %v345 = vld [vmem:[%s288 + $0x14] sm:$0xf]
        %v346 = vld [vmem:[%s288 + $0x18] sm:$0xf]
        %v347 = vld [vmem:[%s288 + $0x1c] sm:$0xf]
        %v348 = vld [vmem:[%s297] sm:$0xf]
        %v349 = vld [vmem:[%s297 + $0x4] sm:$0xf]
        %v350 = vld [vmem:[%s297 + $0x8] sm:$0xf]
        %v351 = vld [vmem:[%s297 + $0xc] sm:$0xf]
        %v352 = vld [vmem:[%s297 + $0x10] sm:$0xf]
        %v353 = vld [vmem:[%s297 + $0x14] sm:$0xf]
        %v354 = vld [vmem:[%s297 + $0x18] sm:$0xf]
        %v355 = vld [vmem:[%s297 + $0x1c] sm:$0xf]
        %v356 = vld [vmem:[#allocation7] sm:$0xf]
        %v357 = vld [vmem:[#allocation7 + $0x4] sm:$0xf]
        %v358 = vld [vmem:[#allocation7 + $0x8] sm:$0xf]
        %v359 = vld [vmem:[#allocation7 + $0xc] sm:$0xf]
        %v360 = vld [vmem:[#allocation7 + $0x10] sm:$0xf]
        %v361 = vld [vmem:[#allocation7 + $0x14] sm:$0xf]
        %v362 = vld [vmem:[#allocation7 + $0x18] sm:$0xf]
        %v363 = vld [vmem:[#allocation7 + $0x1c] sm:$0xf]
        %v364 = vld [vmem:[#allocation7 + $0x20] sm:$0xf]
        %v365 = vld [vmem:[#allocation7 + $0x24] sm:$0xf]
        %v366 = vld [vmem:[#allocation7 + $0x28] sm:$0xf]
        %v367 = vld [vmem:[#allocation7 + $0x2c] sm:$0xf]
        %v368 = vld [vmem:[#allocation7 + $0x30] sm:$0xf]
        %v369 = vld [vmem:[#allocation7 + $0x34] sm:$0xf]
        %v370 = vld [vmem:[#allocation7 + $0x38] sm:$0xf]
        %v371 = vld [vmem:[#allocation7 + $0x3c] sm:$0xf]
        %v380 = vunpack.c.l.b16 %v348
        %v381 = vunpack.c.l.b16 %v349
        %v382 = vunpack.c.l.b16 %v350
        %v383 = vunpack.c.l.b16 %v351
        %v384 = vunpack.c.l.b16 %v352
        %v385 = vunpack.c.l.b16 %v353
        %v386 = vunpack.c.l.b16 %v354
        %v387 = vunpack.c.l.b16 %v355
        %v388 = vpack.c.b16 %v381, %v380
        %v389 = vpack.c.b16 %v383, %v382
        %v390 = vpack.c.b16 %v385, %v384
        %v391 = vpack.c.b16 %v387, %v386
        %v412 = vunpack.c.l.b16 %v356
        %v413 = vunpack.c.l.b16 %v357
        %v414 = vunpack.c.l.b16 %v358
        %v415 = vunpack.c.l.b16 %v359
        %v416 = vunpack.c.l.b16 %v360
        %v417 = vunpack.c.l.b16 %v361
        %v418 = vunpack.c.l.b16 %v362
        %v419 = vunpack.c.l.b16 %v363
        %v420 = vunpack.c.l.b16 %v364
        %v421 = vunpack.c.l.b16 %v365
        %v422 = vunpack.c.l.b16 %v366
        %v423 = vunpack.c.l.b16 %v367
        %v424 = vunpack.c.l.b16 %v368
        %v425 = vunpack.c.l.b16 %v369
        %v426 = vunpack.c.l.b16 %v370
        %v427 = vunpack.c.l.b16 %v371
        %v428 = vpack.c.b16 %v413, %v412
        %v429 = vpack.c.b16 %v415, %v414
        %v430 = vpack.c.b16 %v417, %v416
        %v431 = vpack.c.b16 %v419, %v418
        %v432 = vpack.c.b16 %v421, %v420
        %v433 = vpack.c.b16 %v423, %v422
        %v434 = vpack.c.b16 %v425, %v424
        %v435 = vpack.c.b16 %v427, %v426
        %444 = vmatprep.subr.bf16.mxu0 0
        %445 = vmatpush1.bf16.msra.mxu0 %v428
        %446 = vmatprep.subr.bf16.mxu0 0
        %447 = vmatpush1.bf16.msra.mxu0 %v429
        %448 = vmatprep.subr.bf16.mxu0 0
        %449 = vmatpush1.bf16.msra.mxu0 %v430
        %450 = vmatprep.subr.bf16.mxu0 0
        %451 = vmatpush1.bf16.msra.mxu0 %v431
        %452 = vmatprep.subr.bf16.mxu0 0
        %453 = vmatpush1.bf16.msra.mxu0 %v432
        %454 = vmatprep.subr.bf16.mxu0 0
        %455 = vmatpush1.bf16.msra.mxu0 %v433
        %456 = vmatprep.subr.bf16.mxu0 0
        %457 = vmatpush1.bf16.msra.mxu0 %v434
        %458 = vmatprep.subr.bf16.mxu0 0
        %459 = vmatpush1.bf16.msra.mxu0 %v435
        %460 = vmatprep.subr.bf16.mxu0 0
        %461 = vmatpush1.bf16.msra.mxu0 0
        %462 = vmatprep.subr.bf16.mxu0 0
        %463 = vmatpush1.bf16.msra.mxu0 0
        %464 = vmatprep.subr.bf16.mxu0 0
        %465 = vmatpush1.bf16.msra.mxu0 0
        %466 = vmatprep.subr.bf16.mxu0 0
        %467 = vmatpush1.bf16.msra.mxu0 0
        %468 = vmatprep.subr.bf16.mxu0 0
        %469 = vmatpush1.bf16.msra.mxu0 0
        %470 = vmatprep.subr.bf16.mxu0 0
        %471 = vmatpush1.bf16.msra.mxu0 0
        %472 = vmatprep.subr.bf16.mxu0 0
        %473 = vmatpush1.bf16.msra.mxu0 0
        %474 = vmatprep.subr.bf16.mxu0 0
        %475 = vmatpush1.bf16.msra.mxu0 0
        %476 = vmatprep.mubr.bf16.mxu0 0
        %477 = vmatmul.mubr.bf16.gmra.mrb[0].mxu0 %v388
        %v478 = vpop.f32.mrb[0].mxu0
        %v479 = vadd.f32 0.0, %v478
        %v480 = vpop.f32.mrb[0].mxu0
        %v481 = vpop.f32.mrb[0].mxu0
        %v482 = vadd.f32 0.0, %v481
        %v483 = vpop.f32.mrb[0].mxu0
        %484 = vmatprep.mubr.bf16.mxu0 0
        %485 = vmatmul.mubr.bf16.gmra.mrb[0].mxu0 %v389
        %v486 = vpop.f32.mrb[0].mxu0
        %v487 = vadd.f32 0.0, %v486
        %v488 = vpop.f32.mrb[0].mxu0
        %v489 = vpop.f32.mrb[0].mxu0
        %v490 = vadd.f32 0.0, %v489
        %v491 = vpop.f32.mrb[0].mxu0
        %492 = vmatprep.mubr.bf16.mxu0 0
        %493 = vmatmul.mubr.bf16.gmra.mrb[0].mxu0 %v390
        %v494 = vpop.f32.mrb[0].mxu0
        %v495 = vadd.f32 0.0, %v494
        %v496 = vpop.f32.mrb[0].mxu0
        %v497 = vpop.f32.mrb[0].mxu0
        %v498 = vadd.f32 0.0, %v497
        %v499 = vpop.f32.mrb[0].mxu0
        %500 = vmatprep.mubr.bf16.mxu0 0
        %501 = vmatmul.mubr.bf16.gmra.mrb[0].mxu0 %v391
        %v502 = vpop.f32.mrb[0].mxu0
        %v503 = vadd.f32 0.0, %v502
        %v504 = vpop.f32.mrb[0].mxu0
        %v505 = vpop.f32.mrb[0].mxu0
        %v506 = vadd.f32 0.0, %v505
        %v507 = vpop.f32.mrb[0].mxu0
        %508 = vdwg.mxu0
        %v509 = vpack.c.bf16 %v482, %v479
        %v510 = vpack.c.bf16 %v490, %v487
        %v511 = vpack.c.bf16 %v498, %v495
        %v512 = vpack.c.bf16 %v506, %v503
        %v513 = vld [vmem:[%s3] sm:$0x1]
        %v515 = vlaneseq
        %v516 = vshrl.u32 %v515, 7
        %v517 = vsub.s32 0, %v516
        %v518 = vrot.slane %v513, %v517
        %v528 = vunpack.c.l.b16 %v340
        %v529 = vunpack.c.l.b16 %v341
        %v530 = vunpack.c.l.b16 %v342
        %v531 = vunpack.c.l.b16 %v343
        %v532 = vunpack.c.l.b16 %v344
        %v533 = vunpack.c.l.b16 %v345
        %v534 = vunpack.c.l.b16 %v346
        %v535 = vunpack.c.l.b16 %v347
        %v536 = vpack.c.b16 %v529, %v528
        %v537 = vpack.c.b16 %v531, %v530
        %v538 = vpack.c.b16 %v533, %v532
        %v539 = vpack.c.b16 %v535, %v534
        %vm540 = vcmask 523264
        %v542 = vsel %vm540, %v536, 0
        %v545 = vsel %vm540, %v537, 0
        %v548 = vsel %vm540, %v538, 0
        %v551 = vsel %vm540, %v539, 0
        %553 = vmatprep.subr.bf16.mxu0 0
        %554 = vmatpush1.bf16.msra.mxu0 %v509
        %555 = vmatprep.subr.bf16.mxu0 0
        %556 = vmatpush1.bf16.msra.mxu0 %v510
        %557 = vmatprep.subr.bf16.mxu0 0
        %558 = vmatpush1.bf16.msra.mxu0 %v511
        %559 = vmatprep.subr.bf16.mxu0 0
        %560 = vmatpush1.bf16.msra.mxu0 %v512
        %561 = vmatprep.subr.bf16.mxu0 0
        %562 = vmatpush1.bf16.msra.mxu0 0
        %563 = vmatprep.subr.bf16.mxu0 0
        %564 = vmatpush1.bf16.msra.mxu0 0
        %565 = vmatprep.subr.bf16.mxu0 0
        %566 = vmatpush1.bf16.msra.mxu0 0
        %567 = vmatprep.subr.bf16.mxu0 0
        %568 = vmatpush1.bf16.msra.mxu0 0
        %569 = vmatprep.subr.bf16.mxu0 0
        %570 = vmatpush1.bf16.msra.mxu0 0
        %571 = vmatprep.subr.bf16.mxu0 0
        %572 = vmatpush1.bf16.msra.mxu0 0
        %573 = vmatprep.subr.bf16.mxu0 0
        %574 = vmatpush1.bf16.msra.mxu0 0
        %575 = vmatprep.subr.bf16.mxu0 0
        %576 = vmatpush1.bf16.msra.mxu0 0
        %577 = vmatprep.subr.bf16.mxu0 0
        %578 = vmatpush1.bf16.msra.mxu0 0
        %579 = vmatprep.subr.bf16.mxu0 0
        %580 = vmatpush1.bf16.msra.mxu0 0
        %581 = vmatprep.subr.bf16.mxu0 0
        %582 = vmatpush1.bf16.msra.mxu0 0
        %583 = vmatprep.subr.bf16.mxu0 0
        %584 = vmatpush1.bf16.msra.mxu0 0
        %585 = vmatprep.mubr.bf16.mxu0 0
        %586 = vmatmul.mubr.bf16.gmra.mrb[0].mxu0 %v542
        %v587 = vpop.f32.mrb[0].mxu0
        %v588 = vadd.f32 %v518, %v587
        %v589 = vpop.f32.mrb[0].mxu0
        %v590 = vpop.f32.mrb[0].mxu0
        %v591 = vadd.f32 %v518, %v590
        %v592 = vpop.f32.mrb[0].mxu0
        %593 = vmatprep.mubr.bf16.mxu0 0
        %594 = vmatmul.mubr.bf16.gmra.mrb[0].mxu0 %v545
        %v595 = vpop.f32.mrb[0].mxu0
        %v596 = vadd.f32 %v518, %v595
        %v597 = vpop.f32.mrb[0].mxu0
        %v598 = vpop.f32.mrb[0].mxu0
        %v599 = vadd.f32 %v518, %v598
        %v600 = vpop.f32.mrb[0].mxu0
        %601 = vmatprep.mubr.bf16.mxu0 0
        %602 = vmatmul.mubr.bf16.gmra.mrb[0].mxu0 %v548
        %v603 = vpop.f32.mrb[0].mxu0
        %v604 = vadd.f32 %v518, %v603
        %v605 = vpop.f32.mrb[0].mxu0
        %v606 = vpop.f32.mrb[0].mxu0
        %v607 = vadd.f32 %v518, %v606
        %v608 = vpop.f32.mrb[0].mxu0
        %609 = vmatprep.mubr.bf16.mxu0 0
        %610 = vmatmul.mubr.bf16.gmra.mrb[0].mxu0 %v551
        %v611 = vpop.f32.mrb[0].mxu0
        %v612 = vadd.f32 %v518, %v611
        %v613 = vpop.f32.mrb[0].mxu0
        %v614 = vpop.f32.mrb[0].mxu0
        %v615 = vadd.f32 %v518, %v614
        %v616 = vpop.f32.mrb[0].mxu0
        %617 = vdwg.mxu0
        %v618 = vmax.f32 %v588, 0.0
        %v619 = vmax.f32 %v591, 0.0
        %v620 = vmax.f32 %v596, 0.0
        %v621 = vmax.f32 %v599, 0.0
        %v622 = vmax.f32 %v604, 0.0
        %v623 = vmax.f32 %v607, 0.0
        %v624 = vmax.f32 %v612, 0.0
        %v625 = vmax.f32 %v615, 0.0
        %v626 = vpack.c.bf16 %v619, %v618
        %v627 = vpack.c.bf16 %v621, %v620
        %v628 = vpack.c.bf16 %v623, %v622
        %v629 = vpack.c.bf16 %v625, %v624
        %v630 = vld [vmem:[#allocation8] sm:$0xf]
        %v631 = vld [vmem:[#allocation8 + $0x4] sm:$0xf]
        %v632 = vld [vmem:[#allocation8 + $0x8] sm:$0xf]
        %v633 = vld [vmem:[#allocation8 + $0xc] sm:$0xf]
        %v634 = vld [vmem:[#allocation8 + $0x10] sm:$0xf]
        %v635 = vld [vmem:[#allocation8 + $0x14] sm:$0xf]
        %v636 = vld [vmem:[#allocation8 + $0x18] sm:$0xf]
        %v637 = vld [vmem:[#allocation8 + $0x1c] sm:$0xf]
        %v638 = vld [vmem:[#allocation8 + $0x20] sm:$0xf]
        %v639 = vld [vmem:[#allocation8 + $0x24] sm:$0xf]
        %v640 = vld [vmem:[#allocation8 + $0x28] sm:$0xf]
        %v641 = vld [vmem:[#allocation8 + $0x2c] sm:$0xf]
        %v642 = vld [vmem:[#allocation8 + $0x30] sm:$0xf]
        %v643 = vld [vmem:[#allocation8 + $0x34] sm:$0xf]
        %v644 = vld [vmem:[#allocation8 + $0x38] sm:$0xf]
        %v645 = vld [vmem:[#allocation8 + $0x3c] sm:$0xf]
        %v662 = vunpack.c.l.b16 %v630
        %v663 = vunpack.c.l.b16 %v631
        %v664 = vunpack.c.l.b16 %v632
        %v665 = vunpack.c.l.b16 %v633
        %v666 = vunpack.c.l.b16 %v634
        %v667 = vunpack.c.l.b16 %v635
        %v668 = vunpack.c.l.b16 %v636
        %v669 = vunpack.c.l.b16 %v637
        %v670 = vunpack.c.l.b16 %v638
        %v671 = vunpack.c.l.b16 %v639
        %v672 = vunpack.c.l.b16 %v640
        %v673 = vunpack.c.l.b16 %v641
        %v674 = vunpack.c.l.b16 %v642
        %v675 = vunpack.c.l.b16 %v643
        %v676 = vunpack.c.l.b16 %v644
        %v677 = vunpack.c.l.b16 %v645
        %v678 = vpack.c.b16 %v663, %v662
        %v679 = vpack.c.b16 %v665, %v664
        %v680 = vpack.c.b16 %v667, %v666
        %v681 = vpack.c.b16 %v669, %v668
        %v682 = vpack.c.b16 %v671, %v670
        %v683 = vpack.c.b16 %v673, %v672
        %v684 = vpack.c.b16 %v675, %v674
        %v685 = vpack.c.b16 %v677, %v676
        %694 = vmatprep.subr.bf16.mxu0 0
        %695 = vmatpush1.bf16.msra.mxu0 %v678
        %696 = vmatprep.subr.bf16.mxu0 0
        %697 = vmatpush1.bf16.msra.mxu0 %v679
        %698 = vmatprep.subr.bf16.mxu0 0
        %699 = vmatpush1.bf16.msra.mxu0 %v680
        %700 = vmatprep.subr.bf16.mxu0 0
        %701 = vmatpush1.bf16.msra.mxu0 %v681
        %702 = vmatprep.subr.bf16.mxu0 0
        %703 = vmatpush1.bf16.msra.mxu0 %v682
        %704 = vmatprep.subr.bf16.mxu0 0
        %705 = vmatpush1.bf16.msra.mxu0 %v683
        %706 = vmatprep.subr.bf16.mxu0 0
        %707 = vmatpush1.bf16.msra.mxu0 %v684
        %708 = vmatprep.subr.bf16.mxu0 0
        %709 = vmatpush1.bf16.msra.mxu0 %v685
        %710 = vmatprep.subr.bf16.mxu0 0
        %711 = vmatpush1.bf16.msra.mxu0 0
        %712 = vmatprep.subr.bf16.mxu0 0
        %713 = vmatpush1.bf16.msra.mxu0 0
        %714 = vmatprep.subr.bf16.mxu0 0
        %715 = vmatpush1.bf16.msra.mxu0 0
        %716 = vmatprep.subr.bf16.mxu0 0
        %717 = vmatpush1.bf16.msra.mxu0 0
        %718 = vmatprep.subr.bf16.mxu0 0
        %719 = vmatpush1.bf16.msra.mxu0 0
        %720 = vmatprep.subr.bf16.mxu0 0
        %721 = vmatpush1.bf16.msra.mxu0 0
        %722 = vmatprep.subr.bf16.mxu0 0
        %723 = vmatpush1.bf16.msra.mxu0 0
        %724 = vmatprep.subr.bf16.mxu0 0
        %725 = vmatpush1.bf16.msra.mxu0 0
        %726 = vmatprep.mubr.bf16.mxu0 0
        %727 = vmatmul.mubr.bf16.gmra.mrb[0].mxu0 %v626
        %v728 = vpop.f32.mrb[0].mxu0
        %v729 = vadd.f32 0.0, %v728
        %v730 = vpop.f32.mrb[0].mxu0
        %v731 = vpop.f32.mrb[0].mxu0
        %v732 = vadd.f32 0.0, %v731
        %v733 = vpop.f32.mrb[0].mxu0
        %734 = vmatprep.mubr.bf16.mxu0 0
        %735 = vmatmul.mubr.bf16.gmra.mrb[0].mxu0 %v627
        %v736 = vpop.f32.mrb[0].mxu0
        %v737 = vadd.f32 0.0, %v736
        %v738 = vpop.f32.mrb[0].mxu0
        %v739 = vpop.f32.mrb[0].mxu0
        %v740 = vadd.f32 0.0, %v739
        %v741 = vpop.f32.mrb[0].mxu0
        %742 = vmatprep.mubr.bf16.mxu0 0
        %743 = vmatmul.mubr.bf16.gmra.mrb[0].mxu0 %v628
        %v744 = vpop.f32.mrb[0].mxu0
        %v745 = vadd.f32 0.0, %v744
        %v746 = vpop.f32.mrb[0].mxu0
        %v747 = vpop.f32.mrb[0].mxu0
        %v748 = vadd.f32 0.0, %v747
        %v749 = vpop.f32.mrb[0].mxu0
        %750 = vmatprep.mubr.bf16.mxu0 0
        %751 = vmatmul.mubr.bf16.gmra.mrb[0].mxu0 %v629
        %v752 = vpop.f32.mrb[0].mxu0
        %v753 = vadd.f32 0.0, %v752
        %v754 = vpop.f32.mrb[0].mxu0
        %v755 = vpop.f32.mrb[0].mxu0
        %v756 = vadd.f32 0.0, %v755
        %v757 = vpop.f32.mrb[0].mxu0
        %758 = vdwg.mxu0
        %v759 = vpack.c.bf16 %v732, %v729
        %v760 = vpack.c.bf16 %v740, %v737
        %v761 = vpack.c.bf16 %v748, %v745
        %v762 = vpack.c.bf16 %v756, %v753
        %v763 = vld [vmem:[%s5] sm:$0x1]
        %v765 = vlaneseq
        %v766 = vshrl.u32 %v765, 7
        %v767 = vsub.s32 0, %v766
        %v768 = vrot.slane %v763, %v767
        %770 = vmatprep.subr.bf16.mxu0 0
        %771 = vmatpush1.bf16.msra.mxu0 %v759
        %772 = vmatprep.subr.bf16.mxu0 0
        %773 = vmatpush1.bf16.msra.mxu0 %v760
        %774 = vmatprep.subr.bf16.mxu0 0
        %775 = vmatpush1.bf16.msra.mxu0 %v761
        %776 = vmatprep.subr.bf16.mxu0 0
        %777 = vmatpush1.bf16.msra.mxu0 %v762
        %778 = vmatprep.subr.bf16.mxu0 0
        %779 = vmatpush1.bf16.msra.mxu0 0
        %780 = vmatprep.subr.bf16.mxu0 0
        %781 = vmatpush1.bf16.msra.mxu0 0
        %782 = vmatprep.subr.bf16.mxu0 0
        %783 = vmatpush1.bf16.msra.mxu0 0
        %784 = vmatprep.subr.bf16.mxu0 0
        %785 = vmatpush1.bf16.msra.mxu0 0
        %786 = vmatprep.subr.bf16.mxu0 0
        %787 = vmatpush1.bf16.msra.mxu0 0
        %788 = vmatprep.subr.bf16.mxu0 0
        %789 = vmatpush1.bf16.msra.mxu0 0
        %790 = vmatprep.subr.bf16.mxu0 0
        %791 = vmatpush1.bf16.msra.mxu0 0
        %792 = vmatprep.subr.bf16.mxu0 0
        %793 = vmatpush1.bf16.msra.mxu0 0
        %794 = vmatprep.subr.bf16.mxu0 0
        %795 = vmatpush1.bf16.msra.mxu0 0
        %796 = vmatprep.subr.bf16.mxu0 0
        %797 = vmatpush1.bf16.msra.mxu0 0
        %798 = vmatprep.subr.bf16.mxu0 0
        %799 = vmatpush1.bf16.msra.mxu0 0
        %800 = vmatprep.subr.bf16.mxu0 0
        %801 = vmatpush1.bf16.msra.mxu0 0
        %802 = vmatprep.mubr.bf16.mxu0 0
        %803 = vmatmul.mubr.bf16.gmra.mrb[0].mxu0 %v542
        %v804 = vpop.f32.mrb[0].mxu0
        %v805 = vadd.f32 %v768, %v804
        %v806 = vpop.f32.mrb[0].mxu0
        %v807 = vpop.f32.mrb[0].mxu0
        %v808 = vadd.f32 %v768, %v807
        %v809 = vpop.f32.mrb[0].mxu0
        %810 = vmatprep.mubr.bf16.mxu0 0
        %811 = vmatmul.mubr.bf16.gmra.mrb[0].mxu0 %v545
        %v812 = vpop.f32.mrb[0].mxu0
        %v813 = vadd.f32 %v768, %v812
        %v814 = vpop.f32.mrb[0].mxu0
        %v815 = vpop.f32.mrb[0].mxu0
        %v816 = vadd.f32 %v768, %v815
        %v817 = vpop.f32.mrb[0].mxu0
        %818 = vmatprep.mubr.bf16.mxu0 0
        %819 = vmatmul.mubr.bf16.gmra.mrb[0].mxu0 %v548
        %v820 = vpop.f32.mrb[0].mxu0
        %v821 = vadd.f32 %v768, %v820
        %v822 = vpop.f32.mrb[0].mxu0
        %v823 = vpop.f32.mrb[0].mxu0
        %v824 = vadd.f32 %v768, %v823
        %v825 = vpop.f32.mrb[0].mxu0
        %826 = vmatprep.mubr.bf16.mxu0 0
        %827 = vmatmul.mubr.bf16.gmra.mrb[0].mxu0 %v551
        %v828 = vpop.f32.mrb[0].mxu0
        %v829 = vadd.f32 %v768, %v828
        %v830 = vpop.f32.mrb[0].mxu0
        %v831 = vpop.f32.mrb[0].mxu0
        %v832 = vadd.f32 %v768, %v831
        %v833 = vpop.f32.mrb[0].mxu0
        %834 = vdwg.mxu0
        %835 = vst [vmem:[%s338] sm:$0xff] %v805
        %836 = vst [vmem:[%s338 + $0x8] sm:$0xff] %v808
        %837 = vst [vmem:[%s338 + $0x10] sm:$0xff] %v813
        %838 = vst [vmem:[%s338 + $0x18] sm:$0xff] %v816
        %839 = vst [vmem:[%s338 + $0x20] sm:$0xff] %v821
        %840 = vst [vmem:[%s338 + $0x28] sm:$0xff] %v824
        %841 = vst [vmem:[%s338 + $0x30] sm:$0xff] %v829
        %842 = vst [vmem:[%s338 + $0x38] sm:$0xff] %v832
        %s843 = sand.u32 %s171, 1
        %s844 = scalar_lea.sflag [#allocation4], %s843
        %s845 = sand.u32 %s171, 1
        %s846 = smul.addr %s845, 64
        %s847 = scalar_lea.vmem [#allocation10], %s846
        // Predicated region
        $region61: #{_batched_gcn_forward.1} parent=43 // pred_check
          %p848 = pneg %p181
        $region62: #{_batched_gcn_forward.1} parent=43 // pred_check_branch
          %850 = sbr.rel (%p848) target = $region64
        $region63: #{_batched_gcn_forward.1} parent=43 // pred_region
          %s852 = ssub.s32 1024, 1024
          %853 = vsyncadd %s844, %s852
          %s854 = smul.addr %s27, 8
          %s855 = smul.addr %s854, 128
          %s856 = scalar_lea.hbm %s6, %s855
          %s857 = sshll.u32 %s847, 4
          %s858 = int_to_ptr.vmem [resolvable:$true] %s857
          %863 = dma.vmem_to_hbm [thread:$0]  %s858, 1024, %s856, %s844, 128, 128, 8
        $region64: #{_batched_gcn_forward.1} parent=43 // pred_fallthru
          _
      $region44: #{_batched_gcn_forward.1} parent=5 // pred_fallthru
        _
      %p864 = scmp.le.s32.totalorder 2, %s22
      // Predicated region
      $region65: #{_batched_gcn_forward.1} parent=5 // pred_check
        %p865 = pneg %p864
      $region66: #{_batched_gcn_forward.1} parent=5 // pred_check_branch
        %867 = sbr.rel (%p865) target = $region68
      $region67: #{_batched_gcn_forward.1} parent=5 // pred_region
        %s868 = ssub.s32 %s22, 2
        // Predicated region
        $region69: #{_batched_gcn_forward.1} parent=67 // pred_check
          %p869 = pneg %p187
        $region70: #{_batched_gcn_forward.1} parent=67 // pred_check_branch
          %871 = sbr.rel (%p869) target = $region72
        $region71: #{_batched_gcn_forward.1} parent=67 // pred_region
          %s872 = sand.u32 %s172, 1
          %s873 = scalar_lea.sflag [#allocation4], %s872
          %s874 = sand.u32 %s172, 1
          %s875 = smul.addr %s874, 64
          %s876 = scalar_lea.vmem [#allocation10], %s875
          %877 = dma.done %s873, 1024
        $region72: #{_batched_gcn_forward.1} parent=67 // pred_fallthru
          _
      $region68: #{_batched_gcn_forward.1} parent=5 // pred_fallthru
        _
    $region6: #{_batched_gcn_forward.1} parent=1 // loop_footer
      %s26 = sadd.s32 1, %s22
    $region7: #{_batched_gcn_forward.1} parent=1 // loop_footer_branch
      %21 = sbr.rel target = $region3
    $region8: #{_batched_gcn_forward.1} parent=1 // loop_exit
      _
    %878 = vsyncpa [#allocation3], 1
    %s879 = scalar_lea.sflag [#allocation3], 1
    %880 = vsyncpa %s879, 1
    %881 = vsyncpa [#allocation6], 1
    %s882 = scalar_lea.sflag [#allocation6], 1
    %883 = vsyncpa %s882, 1
    %884 = vsyncpa [#allocation9], 1
    %885 = vsyncpa [#allocation4], 1
    %s886 = scalar_lea.sflag [#allocation4], 1
    %887 = vsyncpa %s886, 1

</llo_original>
